<compile_context>
chip_gen: v5e
topology: v5e:2x2
jax: 0.10.0
libtpu: 0.0.40
codegen_flags: <defaults>
</compile_context>

<pallas_src>
from types import SimpleNamespace

import jax
import jax.numpy as jnp
from jax import lax
from jax.experimental import pallas as pl
from jax.experimental.pallas import tpu as pltpu

F32 = jnp.float32


# ---------------------------------------------------------------------------
# Kernel 1: graph branch (parameter-only; hoisted out of the per-batch forward)
# Computed transposed:
#   h1t = ReLU( sum_i W1_i^T A_i^T )                  (D1, N)
#   h2t = sum_i (W2_i^T h1t) A_i^T                    (P, N)
#   Gr  = b3 + sum_p h2t[p] @ W3p                     (1, H)
# where W3p[n,:] = g3_w[n*P+p, :]  (row-major flatten equivalence).
# ---------------------------------------------------------------------------
def _graph_kernel(at_ref, w1t_ref, w2t_ref, w3_ref, b3_ref, o_ref):
    S = at_ref.shape[0]
    N = at_ref.shape[1]
    P = w2t_ref.shape[1]

    h1t = jnp.dot(w1t_ref[0], at_ref[0], preferred_element_type=F32)
    for i in range(1, S):
        h1t = h1t + jnp.dot(w1t_ref[i], at_ref[i], preferred_element_type=F32)
    h1t = jnp.maximum(h1t, 0.0)                                   # (D1, N), ReLU

    h2t = jnp.zeros((P, N), F32)
    for i in range(S):
        pre_t = jnp.dot(w2t_ref[i], h1t, preferred_element_type=F32)       # (P, N)
        h2t = h2t + jnp.dot(pre_t, at_ref[i], preferred_element_type=F32)  # (P, N)

    gr = b3_ref[...]                                              # (1, H)
    for p in range(P):  # P standard (1,N)@(N,H) matmuls (no lane slices / XLU reduces)
        gr = gr + jnp.dot(h2t[p:p + 1, :], w3_ref[p], preferred_element_type=F32)
    o_ref[...] = gr


def graph_forward(support, W1, W2, g3_w, g3_b):
    S, N, _ = support.shape
    D1 = W1.shape[2]
    P = W2.shape[2]
    H = g3_w.shape[1]
    # wrapper-side layout plumbing only (transposes of parameters)
    at = jnp.transpose(support, (0, 2, 1))                        # (S, N, N)
    w1t = jnp.transpose(W1, (0, 2, 1))                            # (S, D1, N)
    w2t = jnp.transpose(W2, (0, 2, 1))                            # (S, P, D1)
    w3 = jnp.transpose(g3_w.reshape(N, P, H), (1, 0, 2))          # (P, N, H)
    return pl.pallas_call(
        _graph_kernel,
        out_shape=jax.ShapeDtypeStruct((1, H), F32),
        grid=(1,),
        in_specs=[
            pl.BlockSpec((S, N, N), lambda i: (0, 0, 0)),
            pl.BlockSpec((S, D1, N), lambda i: (0, 0, 0)),
            pl.BlockSpec((S, P, D1), lambda i: (0, 0, 0)),
            pl.BlockSpec((P, N, H), lambda i: (0, 0, 0)),
            pl.BlockSpec((1, H), lambda i: (0, 0)),
        ],
        out_specs=pl.BlockSpec((1, H), lambda i: (0, 0)),
    )(at, w1t, w2t, w3, g3_b)


# ---------------------------------------------------------------------------
# Kernel 2: both length-masked single-layer LSTMs on a (lstm, batch-tile) grid.
# Input rows are time-major within a batch tile: row t*bt + i = (time t, batch i).
# ---------------------------------------------------------------------------
def _lstm_kernel(x_ref, len_ref, wih_ref, whh_ref, b_ref, o_ref):
    TB = x_ref.shape[2]
    bt = len_ref.shape[2]
    H = whh_ref.shape[1]
    T = TB // bt

    x = x_ref[0, 0]          # (T*bt, E)
    lens = len_ref[0, 0]     # (bt, 1) int32
    wih = wih_ref[0]         # (E, 4H)
    whh = whh_ref[0]         # (H, 4H)
    bias = b_ref[0]          # (1, 4H)

    # (a) hoisted input projection (+bias): ONE MXU matmul covering every timestep
    xw = jnp.dot(x, wih, preferred_element_type=F32) + bias       # (T*bt, 4H)

    # (b) hoisted validity masks: mask[i, t] = (t < len_i); sliced per step
    masks = lens > lax.broadcasted_iota(jnp.int32, (bt, T), 1)    # (bt, T) bool

    h = jnp.zeros((bt, H), F32)
    c = jnp.zeros((bt, H), F32)
    for t in range(T):       # static unroll; loop carries are only h, c (bt, H)
        r0 = t * bt
        gates = xw[r0:r0 + bt, :] + jnp.dot(h, whh, preferred_element_type=F32)  # (bt, 4H)
        # full-tile sigmoid once (EUP has its own slot), slice afterwards;
        # tanh only on the g slice.  PyTorch gate order: i, f, g, o.
        sig = jax.nn.sigmoid(gates)
        i_g = sig[:, 0:H]
        f_g = sig[:, H:2 * H]
        o_g = sig[:, 3 * H:4 * H]
        g_g = jnp.tanh(gates[:, 2 * H:3 * H])
        c_new = f_g * c + i_g * g_g
        h_new = o_g * jnp.tanh(c_new)
        m = masks[:, t:t + 1]                                     # (bt, 1)
        c = jnp.where(m, c_new, c)
        h = jnp.where(m, h_new, h)
        # (c) per-step store into a lane-dense (bt, T*H) output block
        o_ref[0, 0, :, t * H:(t + 1) * H] = jnp.where(m, h_new, 0.0)


def lstm_pair_forward(x_ctx, len_ctx, x_tgt, len_tgt, params, *, batch_tile=None):
    B, Tc, E = x_ctx.shape
    Tt = x_tgt.shape[1]
    H = params["ctx_whh"].shape[0]
    T = max(Tc, Tt)

    # batch tiling knob: at production sizes on v7x (64 MiB VMEM) pick batch_tile
    # so that the (T*bt,E) input + (bt,T*H) output blocks (double-buffered) fit.
    bt = B if batch_tile is None else int(batch_tile)
    nbt = -(-B // bt)
    Bp = nbt * bt

    def prep(x, L):
        x = jnp.pad(x, ((0, Bp - B), (0, T - x.shape[1]), (0, 0)))         # (Bp, T, E)
        x = x.reshape(nbt, bt, T, E).transpose(0, 2, 1, 3).reshape(nbt, T * bt, E)
        l = jnp.pad(L.astype(jnp.int32), (0, Bp - B)).reshape(nbt, bt, 1)
        return x, l

    xc, lc = prep(x_ctx, len_ctx)
    xt, lt = prep(x_tgt, len_tgt)
    x = jnp.stack([xc, xt], axis=0)                                        # (2, nbt, T*bt, E)
    lens = jnp.stack([lc, lt], axis=0)                                     # (2, nbt, bt, 1)
    wih = jnp.stack([params["ctx_wih"], params["tgt_wih"]], axis=0)        # (2, E, 4H)
    whh = jnp.stack([params["ctx_whh"], params["tgt_whh"]], axis=0)        # (2, H, 4H)
    b = jnp.stack([params["ctx_b"], params["tgt_b"]], axis=0)              # (2, 1, 4H)

    out = pl.pallas_call(
        _lstm_kernel,
        out_shape=jax.ShapeDtypeStruct((2, nbt, bt, T * H), F32),
        grid=(2, nbt),
        in_specs=[
            pl.BlockSpec((1, 1, T * bt, E), lambda s, j: (s, j, 0, 0)),
            pl.BlockSpec((1, 1, bt, 1), lambda s, j: (s, j, 0, 0)),
            pl.BlockSpec((1, E, 4 * H), lambda s, j: (s, 0, 0)),
            pl.BlockSpec((1, H, 4 * H), lambda s, j: (s, 0, 0)),
            pl.BlockSpec((1, 1, 4 * H), lambda s, j: (s, 0, 0)),
        ],
        out_specs=pl.BlockSpec((1, 1, bt, T * H), lambda s, j: (s, j, 0, 0)),
        compiler_params=pltpu.CompilerParams(
            dimension_semantics=("parallel", "parallel"),
            vmem_limit_bytes=32 * 1024 * 1024,   # explicit scoped-VMEM limit (v7x headroom)
        ),
    )(x, lens, wih, whh, b)                                                # (2, nbt, bt, T*H)

    out = out.reshape(2, nbt, bt, T, H).reshape(2, Bp, T, H)[:, :B]        # (2, B, T, H)
    ctx_out = out[0, :, :Tc, :]          # (B, Tc, H)
    tgt_q = out[1, :, :1, :]             # (B, 1, H); Tq==1 required by the
    return ctx_out, tgt_q                # reference's cat([cg,ct],2).squeeze(1)


# ---------------------------------------------------------------------------
# Kernel 3: both MLP-score attentions + final dense, batched over a batch-tile
# grid axis ("parallel" => both TensorCores on v7x).
#   score[b,k] = tanh( ctx[b,k]·vk + ck + q[b]·vq + cq ),
#     vk = wk @ w[:H], ck = bk·w[:H]   (w_k projection folded into the score)
#   p = softmax_k(score)   (exact divide)
#   att[b]  = (sum_k p[b,k] ctx[b,k]) @ wk + bk        (since sum_k p = 1)
#   out = [proj(att_cg) | proj(att_ct)] @ W_dense + b_dense
# Head 0: q = Gr (batch-invariant).  Head 1: q = target LSTM output (B,1,H).
# ctx is passed as (Tk, bt, H) so all reductions are lane- or leading-dim only.
# ---------------------------------------------------------------------------
def _attn_dense_kernel(ctx_ref, tq_ref, gr_ref, wk_ref, bk_ref, wq_ref, bq_ref,
                       pw_ref, pb_ref, mw_ref, dw_ref, db_ref, o_ref):
    nt = (((1,), (1,)), ((), ()))  # contract last dims ("A @ B.T")

    k3 = ctx_ref[0]          # (Tk, bt, H)
    q3 = tq_ref[0]           # (1, bt, H)
    gr = gr_ref[...]         # (1, H)

    att = []
    for hd in range(2):      # head 0 = attention_cg, head 1 = attention_ct
        wk, bk = wk_ref[hd], bk_ref[hd]      # (H, H), (1, H)
        wq, bq = wq_ref[hd], bq_ref[hd]
        mw = mw_ref[hd]                      # (2, H): row0 = w[:H] (k), row1 = w[H:] (q)
        mwk, mwq = mw[0:1, :], mw[1:2, :]

        # fold the w_k / w_q projections into the score
        vk = lax.dot_general(mwk, wk, nt, preferred_element_type=F32)   # (1, H)
        ck = jnp.sum(mwk * bk, axis=-1, keepdims=True)                  # (1, 1)
        vq = lax.dot_general(mwq, wq, nt, preferred_element_type=F32)   # (1, H)
        cq = jnp.sum(mwq * bq, axis=-1, keepdims=True)                  # (1, 1)

        sk = jnp.sum(k3 * vk, axis=-1, keepdims=True)                   # (Tk, bt, 1)
        if hd == 0:
            sq = jnp.sum(gr * vq, axis=-1, keepdims=True)               # (1, 1): Gr is batch-invariant
        else:
            sq = jnp.sum(q3 * vq, axis=-1, keepdims=True)               # (1, bt, 1)
        score = jnp.tanh(sk + (sq + ck + cq))                           # (Tk, bt, 1)

        # softmax over the key axis (leading dim); exact divide for parity
        score = score - jnp.max(score, axis=0, keepdims=True)
        e = jnp.exp(score)
        p = e / jnp.sum(e, axis=0, keepdims=True)                       # (Tk, bt, 1)

        pctx = jnp.sum(p * k3, axis=0)                                  # (bt, H)
        a = jnp.dot(pctx, wk, preferred_element_type=F32) + bk          # == sum_k p * kx
        a = jnp.dot(a, pw_ref[hd], preferred_element_type=F32) + pb_ref[hd]
        att.append(a)

    # dense on cat([cg, ct]); weight pre-split so no lane concat is needed
    o_ref[0] = (jnp.dot(att[0], dw_ref[0], preferred_element_type=F32)
                + jnp.dot(att[1], dw_ref[1], preferred_element_type=F32)
                + db_ref[...])                                          # (bt, P)


def attention_dense_forward(ctx, tq, gr, att_cg, att_ct, dense_w, dense_b):
    B, Tk, H = ctx.shape
    P = dense_w.shape[1]

    n_at = 2 if B >= 2 else 1            # grid over batch halves (2 TCs on v7x)
    bt = -(-B // n_at)
    Bp = n_at * bt
    ctx_p = jnp.pad(ctx, ((0, Bp - B), (0, 0), (0, 0)))
    tq_p = jnp.pad(tq, ((0, Bp - B), (0, 0), (0, 0)))
    ctx_t = ctx_p.reshape(n_at, bt, Tk, H).transpose(0, 2, 1, 3)    # (n_at, Tk, bt, H)
    tq_t = tq_p.reshape(n_at, bt, 1, H).transpose(0, 2, 1, 3)       # (n_at, 1, bt, H)

    def stack(key):
        return jnp.stack([att_cg[key], att_ct[key]], axis=0)

    wk, bk = stack("wk_w"), stack("wk_b")
    wq, bq = stack("wq_w"), stack("wq_b")
    pw, pb = stack("proj_w"), stack("proj_b")
    mw = stack("mlp_w")
    dw = dense_w.reshape(2, H, P)        # rows [:H] -> cg half, [H:] -> ct half

    out = pl.pallas_call(
        _attn_dense_kernel,
        out_shape=jax.ShapeDtypeStruct((n_at, bt, P), F32),
        grid=(n_at,),
        in_specs=[
            pl.BlockSpec((1, Tk, bt, H), lambda j: (j, 0, 0, 0)),
            pl.BlockSpec((1, 1, bt, H), lambda j: (j, 0, 0, 0)),
            pl.BlockSpec((1, H), lambda j: (0, 0)),
            pl.BlockSpec((2, H, H), lambda j: (0, 0, 0)),
            pl.BlockSpec((2, 1, H), lambda j: (0, 0, 0)),
            pl.BlockSpec((2, H, H), lambda j: (0, 0, 0)),
            pl.BlockSpec((2, 1, H), lambda j: (0, 0, 0)),
            pl.BlockSpec((2, H, H), lambda j: (0, 0, 0)),
            pl.BlockSpec((2, 1, H), lambda j: (0, 0, 0)),
            pl.BlockSpec((2, 2, H), lambda j: (0, 0, 0)),
            pl.BlockSpec((2, H, P), lambda j: (0, 0, 0)),
            pl.BlockSpec((1, P), lambda j: (0, 0)),
        ],
        out_specs=pl.BlockSpec((1, bt, P), lambda j: (j, 0, 0)),
        compiler_params=pltpu.CompilerParams(dimension_semantics=("parallel",)),
    )(ctx_t, tq_t, gr, wk, bk, wq, bq, pw, pb, mw, dw, dense_b)

    return out.reshape(Bp, P)[:B]


# ---------------------------------------------------------------------------
# Full GCN forward.  `gr` (graph branch) depends only on parameters and should
# be precomputed once per parameter set (hoisted); recomputed here if not given.
# ---------------------------------------------------------------------------
def gcn_forward(params, opt, text_raw_indices, target_indices, gr=None):
    if gr is None:
        gr = graph_forward(params["support"], params["g1_W"], params["g2_W"],
                           params["g3_w"], params["g3_b"])                # (1, H)

    text_raw_len = jnp.sum(text_raw_indices != 0, axis=-1)
    target_len = jnp.sum(target_indices != 0, axis=-1)
    context = params["embed"][text_raw_indices]   # (B, Tc, E) embedding gather (plain-JAX glue)
    target = params["embed"][target_indices]      # (B, Tt, E)

    ctx_out, tgt_q = lstm_pair_forward(context, text_raw_len,
                                       target, target_len, params)

    out = attention_dense_forward(ctx_out, tgt_q, gr,
                                  params["att_cg"], params["att_ct"],
                                  params["dense_w"], params["dense_b"])   # (B, P)
    return out


# ---------------------------------------------------------------------------
# Deterministic parameter init (shapes follow the module's __init__)
# ---------------------------------------------------------------------------
def init_params(key, opt, N, n_support, vocab):
    keys = jax.random.split(key, 16)

    def nrm(k, shape, scale=0.1):
        return (scale * jax.random.normal(k, shape)).astype(F32)

    P, H, E = opt.polarities_dim, opt.hidden_dim, opt.embed_dim
    params = {}
    params["support"] = nrm(keys[0], (n_support, N, N), 0.2)
    params["g1_W"] = nrm(keys[1], (n_support, N, 200))       # GraphConvolution W_i
    params["g2_W"] = nrm(keys[2], (n_support, 200, P))
    params["g3_w"] = nrm(keys[3], (N * P, H))                # Linear(graph_hidden_dim, H)
    params["g3_b"] = jnp.zeros((1, H), F32)
    params["embed"] = nrm(keys[4], (vocab, E), 1.0).at[0].set(0.0)  # row 0 = pad
    params["ctx_wih"] = nrm(keys[5], (E, 4 * H))
    params["ctx_whh"] = nrm(keys[6], (H, 4 * H))
    params["ctx_b"] = jnp.zeros((1, 4 * H), F32)
    params["tgt_wih"] = nrm(keys[7], (E, 4 * H))
    params["tgt_whh"] = nrm(keys[8], (H, 4 * H))
    params["tgt_b"] = jnp.zeros((1, 4 * H), F32)

    def attn_params(k):
        ks = jax.random.split(k, 4)
        return {
            "wk_w": nrm(ks[0], (H, H)),
            "wk_b": jnp.zeros((1, H), F32),
            "wq_w": nrm(ks[1], (H, H)),
            "wq_b": jnp.zeros((1, H), F32),
            "proj_w": nrm(ks[2], (H, H)),
            "proj_b": jnp.zeros((1, H), F32),
            "mlp_w": nrm(ks[3], (2, H)),  # row0 = weight[:H] (k), row1 = weight[H:] (q)
        }

    params["att_cg"] = attn_params(keys[9])
    params["att_ct"] = attn_params(keys[10])
    params["dense_w"] = nrm(keys[11], (2 * H, P))
    params["dense_b"] = jnp.zeros((1, P), F32)
    return params


if __name__ == "__main__":
    opt = SimpleNamespace(
        batch_size=2, polarities_dim=3, hidden_dim=32, embed_dim=32, dropout=0.0
    )
    N = 16        # graph input_dim (number of graph nodes)
    n_support = 2
    vocab = 50
    T_ctx = 8
    # target length 1 so torch.cat([cg, ct], 2).squeeze(1) is shape-consistent,
    # exactly as required by the reference forward.
    T_tgt = 1

    key = jax.random.PRNGKey(0)
    kp, k1, k2 = jax.random.split(key, 3)
    params = init_params(kp, opt, N, n_support, vocab)

    text_raw_indices = jax.random.randint(k1, (opt.batch_size, T_ctx), 1, vocab)
    text_raw_indices = text_raw_indices.at[1, 5:].set(0)  # trailing padding
    target_indices = jax.random.randint(k2, (opt.batch_size, T_tgt), 1, vocab)

    # graph branch hoisted: Gr is a pure function of the parameters
    gr = graph_forward(params["support"], params["g1_W"], params["g2_W"],
                       params["g3_w"], params["g3_b"])
    gr = jax.block_until_ready(gr)

    out = gcn_forward(params, opt, text_raw_indices, target_indices, gr=gr)
    out = jax.block_until_ready(out)
    assert out.shape == (opt.batch_size, opt.polarities_dim)
    print("KERNEL_OK")
</pallas_src>

<mosaic_0001>
module attributes {stable_mosaic.version = 11 : i64} {
  func.func @_graph_kernel(%arg0: i32, %arg1: memref<2x16x16xf32, #tpu.memory_space<vmem>>, %arg2: memref<2x200x16xf32, #tpu.memory_space<vmem>>, %arg3: memref<2x3x200xf32, #tpu.memory_space<vmem>>, %arg4: memref<3x16x32xf32, #tpu.memory_space<vmem>>, %arg5: memref<1x32xf32, #tpu.memory_space<vmem>>, %arg6: memref<1x32xf32, #tpu.memory_space<vmem>>) attributes {dimension_semantics = [#tpu.dimension_semantics<arbitrary>], iteration_bounds = array<i64: 1>, scalar_prefetch = 0 : i64, scratch_operands = 0 : i64, tpu.core_type = #tpu.core_type<tc>, window_params = [{pipeline_mode = #tpu.pipeline_mode<synchronous>, transform_indices = @transform_0, window_bounds = array<i64: 2, 16, 16>}, {pipeline_mode = #tpu.pipeline_mode<synchronous>, transform_indices = @transform_1, window_bounds = array<i64: 2, 200, 16>}, {pipeline_mode = #tpu.pipeline_mode<synchronous>, transform_indices = @transform_2, window_bounds = array<i64: 2, 3, 200>}, {pipeline_mode = #tpu.pipeline_mode<synchronous>, transform_indices = @transform_3, window_bounds = array<i64: 3, 16, 32>}, {pipeline_mode = #tpu.pipeline_mode<synchronous>, transform_indices = @transform_4, window_bounds = array<i64: 1, 32>}, {pipeline_mode = #tpu.pipeline_mode<synchronous>, transform_indices = @transform_5, window_bounds = array<i64: 1, 32>}]} {
    %c0 = arith.constant 0 : index
    %c0_0 = arith.constant 0 : index
    %c0_1 = arith.constant 0 : index
    %0 = vector.load %arg2[%c0, %c0_0, %c0_1] : memref<2x200x16xf32, #tpu.memory_space<vmem>>, vector<1x200x16xf32>
    %1 = vector.shape_cast %0 : vector<1x200x16xf32> to vector<200x16xf32>
    %c0_2 = arith.constant 0 : index
    %c0_3 = arith.constant 0 : index
    %c0_4 = arith.constant 0 : index
    %2 = vector.load %arg1[%c0_2, %c0_3, %c0_4] : memref<2x16x16xf32, #tpu.memory_space<vmem>>, vector<1x16x16xf32>
    %3 = vector.shape_cast %2 : vector<1x16x16xf32> to vector<16x16xf32>
    %cst = arith.constant dense<0.000000e+00> : vector<200x16xf32>
    %4 = tpu.matmul %1, %3, %cst {dimension_numbers = #tpu.dot_dimension_numbers<[1], [0], [0], [1], [0, 0, 1, 1], [], []>} : vector<200x16xf32>, vector<16x16xf32>, vector<200x16xf32> -> vector<200x16xf32>
    %c1 = arith.constant 1 : index
    %c0_5 = arith.constant 0 : index
    %c0_6 = arith.constant 0 : index
    %5 = vector.load %arg2[%c1, %c0_5, %c0_6] : memref<2x200x16xf32, #tpu.memory_space<vmem>>, vector<1x200x16xf32>
    %6 = vector.shape_cast %5 : vector<1x200x16xf32> to vector<200x16xf32>
    %c1_7 = arith.constant 1 : index
    %c0_8 = arith.constant 0 : index
    %c0_9 = arith.constant 0 : index
    %7 = vector.load %arg1[%c1_7, %c0_8, %c0_9] : memref<2x16x16xf32, #tpu.memory_space<vmem>>, vector<1x16x16xf32>
    %8 = vector.shape_cast %7 : vector<1x16x16xf32> to vector<16x16xf32>
    %cst_10 = arith.constant dense<0.000000e+00> : vector<200x16xf32>
    %9 = tpu.matmul %6, %8, %cst_10 {dimension_numbers = #tpu.dot_dimension_numbers<[1], [0], [0], [1], [0, 0, 1, 1], [], []>} : vector<200x16xf32>, vector<16x16xf32>, vector<200x16xf32> -> vector<200x16xf32>
    %10 = arith.addf %4, %9 : vector<200x16xf32>
    %cst_11 = arith.constant 0.000000e+00 : f32
    %11 = vector.broadcast %cst_11 : f32 to vector<200x16xf32>
    %12 = arith.maximumf %10, %11 : vector<200x16xf32>
    %cst_12 = arith.constant 0.000000e+00 : f32
    %13 = vector.broadcast %cst_12 : f32 to vector<3x16xf32>
    %c0_13 = arith.constant 0 : index
    %c0_14 = arith.constant 0 : index
    %c0_15 = arith.constant 0 : index
    %14 = vector.load %arg3[%c0_13, %c0_14, %c0_15] : memref<2x3x200xf32, #tpu.memory_space<vmem>>, vector<1x3x200xf32>
    %15 = vector.shape_cast %14 : vector<1x3x200xf32> to vector<3x200xf32>
    %cst_16 = arith.constant dense<0.000000e+00> : vector<3x16xf32>
    %16 = tpu.matmul %15, %12, %cst_16 {dimension_numbers = #tpu.dot_dimension_numbers<[1], [0], [0], [1], [0, 0, 1, 1], [], []>} : vector<3x200xf32>, vector<200x16xf32>, vector<3x16xf32> -> vector<3x16xf32>
    %c0_17 = arith.constant 0 : index
    %c0_18 = arith.constant 0 : index
    %c0_19 = arith.constant 0 : index
    %17 = vector.load %arg1[%c0_17, %c0_18, %c0_19] : memref<2x16x16xf32, #tpu.memory_space<vmem>>, vector<1x16x16xf32>
    %18 = vector.shape_cast %17 : vector<1x16x16xf32> to vector<16x16xf32>
    %cst_20 = arith.constant dense<0.000000e+00> : vector<3x16xf32>
    %19 = tpu.matmul %16, %18, %cst_20 {dimension_numbers = #tpu.dot_dimension_numbers<[1], [0], [0], [1], [0, 0, 1, 1], [], []>} : vector<3x16xf32>, vector<16x16xf32>, vector<3x16xf32> -> vector<3x16xf32>
    %20 = arith.addf %13, %19 : vector<3x16xf32>
    %c1_21 = arith.constant 1 : index
    %c0_22 = arith.constant 0 : index
    %c0_23 = arith.constant 0 : index
    %21 = vector.load %arg3[%c1_21, %c0_22, %c0_23] : memref<2x3x200xf32, #tpu.memory_space<vmem>>, vector<1x3x200xf32>
    %22 = vector.shape_cast %21 : vector<1x3x200xf32> to vector<3x200xf32>
    %cst_24 = arith.constant dense<0.000000e+00> : vector<3x16xf32>
    %23 = tpu.matmul %22, %12, %cst_24 {dimension_numbers = #tpu.dot_dimension_numbers<[1], [0], [0], [1], [0, 0, 1, 1], [], []>} : vector<3x200xf32>, vector<200x16xf32>, vector<3x16xf32> -> vector<3x16xf32>
    %c1_25 = arith.constant 1 : index
    %c0_26 = arith.constant 0 : index
    %c0_27 = arith.constant 0 : index
    %24 = vector.load %arg1[%c1_25, %c0_26, %c0_27] : memref<2x16x16xf32, #tpu.memory_space<vmem>>, vector<1x16x16xf32>
    %25 = vector.shape_cast %24 : vector<1x16x16xf32> to vector<16x16xf32>
    %cst_28 = arith.constant dense<0.000000e+00> : vector<3x16xf32>
    %26 = tpu.matmul %23, %25, %cst_28 {dimension_numbers = #tpu.dot_dimension_numbers<[1], [0], [0], [1], [0, 0, 1, 1], [], []>} : vector<3x16xf32>, vector<16x16xf32>, vector<3x16xf32> -> vector<3x16xf32>
    %27 = arith.addf %20, %26 : vector<3x16xf32>
    %c0_29 = arith.constant 0 : index
    %c0_30 = arith.constant 0 : index
    %28 = vector.load %arg5[%c0_29, %c0_30] : memref<1x32xf32, #tpu.memory_space<vmem>>, vector<1x32xf32>
    %29 = vector.extract_strided_slice %27 {offsets = [0, 0], sizes = [1, 16], strides = [1, 1]} : vector<3x16xf32> to vector<1x16xf32>
    %c0_31 = arith.constant 0 : index
    %c0_32 = arith.constant 0 : index
    %c0_33 = arith.constant 0 : index
    %30 = vector.load %arg4[%c0_31, %c0_32, %c0_33] : memref<3x16x32xf32, #tpu.memory_space<vmem>>, vector<1x16x32xf32>
    %31 = vector.shape_cast %30 : vector<1x16x32xf32> to vector<16x32xf32>
    %cst_34 = arith.constant dense<0.000000e+00> : vector<1x32xf32>
    %32 = tpu.matmul %29, %31, %cst_34 {dimension_numbers = #tpu.dot_dimension_numbers<[1], [0], [0], [1], [0, 0, 1, 1], [], []>} : vector<1x16xf32>, vector<16x32xf32>, vector<1x32xf32> -> vector<1x32xf32>
    %33 = arith.addf %28, %32 : vector<1x32xf32>
    %34 = vector.extract_strided_slice %27 {offsets = [1, 0], sizes = [1, 16], strides = [1, 1]} : vector<3x16xf32> to vector<1x16xf32>
    %c1_35 = arith.constant 1 : index
    %c0_36 = arith.constant 0 : index
    %c0_37 = arith.constant 0 : index
    %35 = vector.load %arg4[%c1_35, %c0_36, %c0_37] : memref<3x16x32xf32, #tpu.memory_space<vmem>>, vector<1x16x32xf32>
    %36 = vector.shape_cast %35 : vector<1x16x32xf32> to vector<16x32xf32>
    %cst_38 = arith.constant dense<0.000000e+00> : vector<1x32xf32>
    %37 = tpu.matmul %34, %36, %cst_38 {dimension_numbers = #tpu.dot_dimension_numbers<[1], [0], [0], [1], [0, 0, 1, 1], [], []>} : vector<1x16xf32>, vector<16x32xf32>, vector<1x32xf32> -> vector<1x32xf32>
    %38 = arith.addf %33, %37 : vector<1x32xf32>
    %39 = vector.extract_strided_slice %27 {offsets = [2, 0], sizes = [1, 16], strides = [1, 1]} : vector<3x16xf32> to vector<1x16xf32>
    %c2 = arith.constant 2 : index
    %c0_39 = arith.constant 0 : index
    %c0_40 = arith.constant 0 : index
    %40 = vector.load %arg4[%c2, %c0_39, %c0_40] : memref<3x16x32xf32, #tpu.memory_space<vmem>>, vector<1x16x32xf32>
    %41 = vector.shape_cast %40 : vector<1x16x32xf32> to vector<16x32xf32>
    %cst_41 = arith.constant dense<0.000000e+00> : vector<1x32xf32>
    %42 = tpu.matmul %39, %41, %cst_41 {dimension_numbers = #tpu.dot_dimension_numbers<[1], [0], [0], [1], [0, 0, 1, 1], [], []>} : vector<1x16xf32>, vector<16x32xf32>, vector<1x32xf32> -> vector<1x32xf32>
    %43 = arith.addf %38, %42 : vector<1x32xf32>
    %c0_42 = arith.constant 0 : index
    %c0_43 = arith.constant 0 : index
    %44 = vector.load %arg6[%c0_42, %c0_43] : memref<1x32xf32, #tpu.memory_space<vmem>>, vector<1x32xf32>
    tpu.vector_store %arg6[%c0_42, %c0_43], %43 {strides = array<i32>} : memref<1x32xf32, #tpu.memory_space<vmem>>, vector<1x32xf32>,
    return
  }
  func.func @transform_0(%arg0: i32) -> (i32, i32, i32) {
    %c0_i32 = arith.constant 0 : i32
    %c0_i32_0 = arith.constant 0 : i32
    %c0_i32_1 = arith.constant 0 : i32
    %c0_i32_2 = arith.constant 0 : i32
    return %c0_i32, %c0_i32_0, %c0_i32_1 : i32, i32, i32
  }
  func.func @transform_1(%arg0: i32) -> (i32, i32, i32) {
    %c0_i32 = arith.constant 0 : i32
    %c0_i32_0 = arith.constant 0 : i32
    %c0_i32_1 = arith.constant 0 : i32
    %c0_i32_2 = arith.constant 0 : i32
    return %c0_i32, %c0_i32_0, %c0_i32_1 : i32, i32, i32
  }
  func.func @transform_2(%arg0: i32) -> (i32, i32, i32) {
    %c0_i32 = arith.constant 0 : i32
    %c0_i32_0 = arith.constant 0 : i32
    %c0_i32_1 = arith.constant 0 : i32
    %c0_i32_2 = arith.constant 0 : i32
    return %c0_i32, %c0_i32_0, %c0_i32_1 : i32, i32, i32
  }
  func.func @transform_3(%arg0: i32) -> (i32, i32, i32) {
    %c0_i32 = arith.constant 0 : i32
    %c0_i32_0 = arith.constant 0 : i32
    %c0_i32_1 = arith.constant 0 : i32
    %c0_i32_2 = arith.constant 0 : i32
    return %c0_i32, %c0_i32_0, %c0_i32_1 : i32, i32, i32
  }
  func.func @transform_4(%arg0: i32) -> (i32, i32) {
    %c0_i32 = arith.constant 0 : i32
    %c0_i32_0 = arith.constant 0 : i32
    %c0_i32_1 = arith.constant 0 : i32
    return %c0_i32, %c0_i32_0 : i32, i32
  }
  func.func @transform_5(%arg0: i32) -> (i32, i32) {
    %c0_i32 = arith.constant 0 : i32
    %c0_i32_0 = arith.constant 0 : i32
    %c0_i32_1 = arith.constant 0 : i32
    return %c0_i32, %c0_i32_0 : i32, i32
  }
}

</mosaic_0001>

<llo_original>
// kernel: tpu_custom_call.1
$region0: #{tpu_custom_call.1}
  #allocation0 [shape = 'u32[]', space=smem, size = 0x4, offset = 0x4, fixed_abs, tag = 'smem constant byte address 0x4 - core index']
  #allocation1 [shape = 'u32[72,128]{1,0:T(1,128)}', space=vmem, size = 0x9000, scoped, tag = 'internal scratch']
  %s0 = inlined_call_operand.vmem [shape: f32[2,16,16], index: 0, kind: input, shape index: {}]
  %s1 = inlined_call_operand.vmem [shape: f32[2,200,16], index: 1, kind: input, shape index: {}]
  %s2 = inlined_call_operand.vmem [shape: f32[2,3,200], index: 2, kind: input, shape index: {}]
  %s3 = inlined_call_operand.vmem [shape: f32[3,16,32], index: 3, kind: input, shape index: {}]
  %s4 = inlined_call_operand.vmem [shape: f32[1,32], index: 4, kind: input, shape index: {}]
  %s5 = inlined_call_operand.hbm [shape: f32[1,32], index: 5, kind: output, shape index: {}]
  %s6 = sld [smem:[#allocation0]]
  $region30: #{tpu_custom_call.1} parent=0
    _
  %s8 = ssub.s32 1, %s6
  %s9 = scalar_select 0, %s8, %s6
  $region1: #{tpu_custom_call.1} parent=0
    #allocation2 [shape = 'u8[512]{0}', space=vmem, size = 0x400, scoped, tag = 'output window, operand 0, single buffered']
    #allocation3 [shape = 's32[1]{0}', space=sflag, size = 0x4, scoped, tag = 'scoped memory for tpu_custom_call.1']
    %10 = vsyncpa [#allocation3], 0
    // Predicated region
    $region2: #{tpu_custom_call.1} parent=1 // pred_check
      _
    $region3: #{tpu_custom_call.1} parent=1 // pred_check_branch
      %12 = sbr.rel (0) target = $region5
    $region4: #{tpu_custom_call.1} parent=1 // pred_region
      _
    $region5: #{tpu_custom_call.1} parent=1 // pred_fallthru
      _
    // Predicated region
    $region6: #{tpu_custom_call.1} parent=1 // pred_check
      _
    $region7: #{tpu_custom_call.1} parent=1 // pred_check_branch
      %14 = sbr.rel (0) target = $region9
    $region8: #{tpu_custom_call.1} parent=1 // pred_region
      _
    $region9: #{tpu_custom_call.1} parent=1 // pred_fallthru
      _
    // Predicated region
    $region10: #{tpu_custom_call.1} parent=1 // pred_check
      _
    $region11: #{tpu_custom_call.1} parent=1 // pred_check_branch
      %16 = sbr.rel (0) target = $region13
    $region12: #{tpu_custom_call.1} parent=1 // pred_region
      _
    $region13: #{tpu_custom_call.1} parent=1 // pred_fallthru
      _
    // Predicated region
    $region14: #{tpu_custom_call.1} parent=1 // pred_check
      _
    $region15: #{tpu_custom_call.1} parent=1 // pred_check_branch
      %18 = sbr.rel (0) target = $region17
    $region16: #{tpu_custom_call.1} parent=1 // pred_region
      _
    $region17: #{tpu_custom_call.1} parent=1 // pred_fallthru
      _
    // Predicated region
    $region18: #{tpu_custom_call.1} parent=1 // pred_check
      _
    $region19: #{tpu_custom_call.1} parent=1 // pred_check_branch
      %20 = sbr.rel (0) target = $region21
    $region20: #{tpu_custom_call.1} parent=1 // pred_region
      _
    $region21: #{tpu_custom_call.1} parent=1 // pred_fallthru
      _
    %v21 = vld [vmem:[%s1] sm:$0xff]
    %v22 = vld [vmem:[%s1 + $0x8] sm:$0xff]
    %v23 = vld [vmem:[%s1 + $0x10] sm:$0xff]
    %v24 = vld [vmem:[%s1 + $0x18] sm:$0xff]
    %v25 = vld [vmem:[%s1 + $0x20] sm:$0xff]
    %v26 = vld [vmem:[%s1 + $0x28] sm:$0xff]
    %v27 = vld [vmem:[%s1 + $0x30] sm:$0xff]
    %v28 = vld [vmem:[%s1 + $0x38] sm:$0xff]
    %v29 = vld [vmem:[%s1 + $0x40] sm:$0xff]
    %v30 = vld [vmem:[%s1 + $0x48] sm:$0xff]
    %v31 = vld [vmem:[%s1 + $0x50] sm:$0xff]
    %v32 = vld [vmem:[%s1 + $0x58] sm:$0xff]
    %v33 = vld [vmem:[%s1 + $0x60] sm:$0xff]
    %v34 = vld [vmem:[%s1 + $0x68] sm:$0xff]
    %v35 = vld [vmem:[%s1 + $0x70] sm:$0xff]
    %v36 = vld [vmem:[%s1 + $0x78] sm:$0xff]
    %v37 = vld [vmem:[%s1 + $0x80] sm:$0xff]
    %v38 = vld [vmem:[%s1 + $0x88] sm:$0xff]
    %v39 = vld [vmem:[%s1 + $0x90] sm:$0xff]
    %v40 = vld [vmem:[%s1 + $0x98] sm:$0xff]
    %v41 = vld [vmem:[%s1 + $0xa0] sm:$0xff]
    %v42 = vld [vmem:[%s1 + $0xa8] sm:$0xff]
    %v43 = vld [vmem:[%s1 + $0xb0] sm:$0xff]
    %v44 = vld [vmem:[%s1 + $0xb8] sm:$0xff]
    %v45 = vld [vmem:[%s1 + $0xc0] sm:$0xff]
    %v46 = vld [vmem:[%s0] sm:$0xff]
    %v47 = vld [vmem:[%s0 + $0x8] sm:$0xff]
    %s48 = scalar_lea.vmem %s1, 200
    %v49 = vld [vmem:[%s48] sm:$0xff]
    %v50 = vld [vmem:[%s48 + $0x8] sm:$0xff]
    %v51 = vld [vmem:[%s48 + $0x10] sm:$0xff]
    %v52 = vld [vmem:[%s48 + $0x18] sm:$0xff]
    %v53 = vld [vmem:[%s48 + $0x20] sm:$0xff]
    %v54 = vld [vmem:[%s48 + $0x28] sm:$0xff]
    %v55 = vld [vmem:[%s48 + $0x30] sm:$0xff]
    %v56 = vld [vmem:[%s48 + $0x38] sm:$0xff]
    %v57 = vld [vmem:[%s48 + $0x40] sm:$0xff]
    %v58 = vld [vmem:[%s48 + $0x48] sm:$0xff]
    %v59 = vld [vmem:[%s48 + $0x50] sm:$0xff]
    %v60 = vld [vmem:[%s48 + $0x58] sm:$0xff]
    %v61 = vld [vmem:[%s48 + $0x60] sm:$0xff]
    %v62 = vld [vmem:[%s48 + $0x68] sm:$0xff]
    %v63 = vld [vmem:[%s48 + $0x70] sm:$0xff]
    %v64 = vld [vmem:[%s48 + $0x78] sm:$0xff]
    %v65 = vld [vmem:[%s48 + $0x80] sm:$0xff]
    %v66 = vld [vmem:[%s48 + $0x88] sm:$0xff]
    %v67 = vld [vmem:[%s48 + $0x90] sm:$0xff]
    %v68 = vld [vmem:[%s48 + $0x98] sm:$0xff]
    %v69 = vld [vmem:[%s48 + $0xa0] sm:$0xff]
    %v70 = vld [vmem:[%s48 + $0xa8] sm:$0xff]
    %v71 = vld [vmem:[%s48 + $0xb0] sm:$0xff]
    %v72 = vld [vmem:[%s48 + $0xb8] sm:$0xff]
    %v73 = vld [vmem:[%s48 + $0xc0] sm:$0xff]
    %s74 = scalar_lea.vmem %s0, 16
    %v75 = vld [vmem:[%s74] sm:$0xff]
    %v76 = vld [vmem:[%s74 + $0x8] sm:$0xff]
    %vm77 = vcmask 130048
    %v79 = vsel %vm77, %v49, 0
    %v82 = vsel %vm77, %v50, 0
    %v85 = vsel %vm77, %v51, 0
    %v88 = vsel %vm77, %v52, 0
    %v91 = vsel %vm77, %v53, 0
    %v94 = vsel %vm77, %v54, 0
    %v97 = vsel %vm77, %v55, 0
    %v100 = vsel %vm77, %v56, 0
    %v103 = vsel %vm77, %v57, 0
    %v106 = vsel %vm77, %v58, 0
    %v109 = vsel %vm77, %v59, 0
    %v112 = vsel %vm77, %v60, 0
    %v115 = vsel %vm77, %v61, 0
    %v118 = vsel %vm77, %v62, 0
    %v121 = vsel %vm77, %v63, 0
    %v124 = vsel %vm77, %v64, 0
    %v127 = vsel %vm77, %v65, 0
    %v130 = vsel %vm77, %v66, 0
    %v133 = vsel %vm77, %v67, 0
    %v136 = vsel %vm77, %v68, 0
    %v139 = vsel %vm77, %v69, 0
    %v142 = vsel %vm77, %v70, 0
    %v145 = vsel %vm77, %v71, 0
    %v148 = vsel %vm77, %v72, 0
    %v151 = vsel %vm77, %v73, 0
    %153 = vmatpush.msra.mxu0 0.0
    %154 = vmatpush.msra.mxu0 0.0
    %155 = vmatpush.msra.mxu0 0.0
    %156 = vmatpush.msra.mxu0 0.0
    %157 = vmatpush.msra.mxu0 0.0
    %158 = vmatpush.msra.mxu0 0.0
    %159 = vmatpush.msra.mxu0 0.0
    %160 = vmatpush.msra.mxu0 0.0
    %161 = vmatpush.msra.mxu0 0.0
    %162 = vmatpush.msra.mxu0 0.0
    %163 = vmatpush.msra.mxu0 0.0
    %164 = vmatpush.msra.mxu0 0.0
    %165 = vmatpush.msra.mxu0 0.0
    %166 = vmatpush.msra.mxu0 0.0
    %167 = vmatpush.msra.mxu0 %v76
    %168 = vmatpush.msra.mxu0 %v75
    %169 = vmatmul.f32.gmra.mxu0 %v79
    %v170 = vpop.f32.mrf.mxu0
    %v171 = vadd.f32 0.0, %v170
    %172 = vmatmul.f32.gmra.mxu0 %v82
    %v173 = vpop.f32.mrf.mxu0
    %v174 = vadd.f32 0.0, %v173
    %175 = vmatmul.f32.gmra.mxu0 %v85
    %v176 = vpop.f32.mrf.mxu0
    %v177 = vadd.f32 0.0, %v176
    %178 = vmatmul.f32.gmra.mxu0 %v88
    %v179 = vpop.f32.mrf.mxu0
    %v180 = vadd.f32 0.0, %v179
    %181 = vmatmul.f32.gmra.mxu0 %v91
    %v182 = vpop.f32.mrf.mxu0
    %v183 = vadd.f32 0.0, %v182
    %184 = vmatmul.f32.gmra.mxu0 %v94
    %v185 = vpop.f32.mrf.mxu0
    %v186 = vadd.f32 0.0, %v185
    %187 = vmatmul.f32.gmra.mxu0 %v97
    %v188 = vpop.f32.mrf.mxu0
    %v189 = vadd.f32 0.0, %v188
    %190 = vmatmul.f32.gmra.mxu0 %v100
    %v191 = vpop.f32.mrf.mxu0
    %v192 = vadd.f32 0.0, %v191
    %193 = vmatmul.f32.gmra.mxu0 %v103
    %v194 = vpop.f32.mrf.mxu0
    %v195 = vadd.f32 0.0, %v194
    %196 = vmatmul.f32.gmra.mxu0 %v106
    %v197 = vpop.f32.mrf.mxu0
    %v198 = vadd.f32 0.0, %v197
    %199 = vmatmul.f32.gmra.mxu0 %v109
    %v200 = vpop.f32.mrf.mxu0
    %v201 = vadd.f32 0.0, %v200
    %202 = vmatmul.f32.gmra.mxu0 %v112
    %v203 = vpop.f32.mrf.mxu0
    %v204 = vadd.f32 0.0, %v203
    %205 = vmatmul.f32.gmra.mxu0 %v115
    %v206 = vpop.f32.mrf.mxu0
    %v207 = vadd.f32 0.0, %v206
    %208 = vmatmul.f32.gmra.mxu0 %v118
    %v209 = vpop.f32.mrf.mxu0
    %v210 = vadd.f32 0.0, %v209
    %211 = vmatmul.f32.gmra.mxu0 %v121
    %v212 = vpop.f32.mrf.mxu0
    %v213 = vadd.f32 0.0, %v212
    %214 = vmatmul.f32.gmra.mxu0 %v124
    %v215 = vpop.f32.mrf.mxu0
    %v216 = vadd.f32 0.0, %v215
    %217 = vmatmul.f32.gmra.mxu0 %v127
    %v218 = vpop.f32.mrf.mxu0
    %v219 = vadd.f32 0.0, %v218
    %220 = vmatmul.f32.gmra.mxu0 %v130
    %v221 = vpop.f32.mrf.mxu0
    %v222 = vadd.f32 0.0, %v221
    %223 = vmatmul.f32.gmra.mxu0 %v133
    %v224 = vpop.f32.mrf.mxu0
    %v225 = vadd.f32 0.0, %v224
    %226 = vmatmul.f32.gmra.mxu0 %v136
    %v227 = vpop.f32.mrf.mxu0
    %v228 = vadd.f32 0.0, %v227
    %229 = vmatmul.f32.gmra.mxu0 %v139
    %v230 = vpop.f32.mrf.mxu0
    %v231 = vadd.f32 0.0, %v230
    %232 = vmatmul.f32.gmra.mxu0 %v142
    %v233 = vpop.f32.mrf.mxu0
    %v234 = vadd.f32 0.0, %v233
    %235 = vmatmul.f32.gmra.mxu0 %v145
    %v236 = vpop.f32.mrf.mxu0
    %v237 = vadd.f32 0.0, %v236
    %238 = vmatmul.f32.gmra.mxu0 %v148
    %v239 = vpop.f32.mrf.mxu0
    %v240 = vadd.f32 0.0, %v239
    %241 = vmatmul.f32.gmra.mxu0 %v151
    %v242 = vpop.f32.mrf.mxu0
    %v243 = vadd.f32 0.0, %v242
    %244 = vdwg.mxu0
    %v246 = vsel %vm77, %v21, 0
    %v249 = vsel %vm77, %v22, 0
    %v252 = vsel %vm77, %v23, 0
    %v255 = vsel %vm77, %v24, 0
    %v258 = vsel %vm77, %v25, 0
    %v261 = vsel %vm77, %v26, 0
    %v264 = vsel %vm77, %v27, 0
    %v267 = vsel %vm77, %v28, 0
    %v270 = vsel %vm77, %v29, 0
    %v273 = vsel %vm77, %v30, 0
    %v276 = vsel %vm77, %v31, 0
    %v279 = vsel %vm77, %v32, 0
    %v282 = vsel %vm77, %v33, 0
    %v285 = vsel %vm77, %v34, 0
    %v288 = vsel %vm77, %v35, 0
    %v291 = vsel %vm77, %v36, 0
    %v294 = vsel %vm77, %v37, 0
    %v297 = vsel %vm77, %v38, 0
    %v300 = vsel %vm77, %v39, 0
    %v303 = vsel %vm77, %v40, 0
    %v306 = vsel %vm77, %v41, 0
    %v309 = vsel %vm77, %v42, 0
    %v312 = vsel %vm77, %v43, 0
    %v315 = vsel %vm77, %v44, 0
    %v318 = vsel %vm77, %v45, 0
    %320 = vmatpush.msra.mxu0 0.0
    %321 = vmatpush.msra.mxu0 0.0
    %322 = vmatpush.msra.mxu0 0.0
    %323 = vmatpush.msra.mxu0 0.0
    %324 = vmatpush.msra.mxu0 0.0
    %325 = vmatpush.msra.mxu0 0.0
    %326 = vmatpush.msra.mxu0 0.0
    %327 = vmatpush.msra.mxu0 0.0
    %328 = vmatpush.msra.mxu0 0.0
    %329 = vmatpush.msra.mxu0 0.0
    %330 = vmatpush.msra.mxu0 0.0
    %331 = vmatpush.msra.mxu0 0.0
    %332 = vmatpush.msra.mxu0 0.0
    %333 = vmatpush.msra.mxu0 0.0
    %334 = vmatpush.msra.mxu0 %v47
    %335 = vmatpush.msra.mxu0 %v46
    %336 = vmatmul.f32.gmra.mxu0 %v246
    %v337 = vpop.f32.mrf.mxu0
    %v338 = vadd.f32 %v171, %v337
    %339 = vmatmul.f32.gmra.mxu0 %v249
    %v340 = vpop.f32.mrf.mxu0
    %v341 = vadd.f32 %v174, %v340
    %342 = vmatmul.f32.gmra.mxu0 %v252
    %v343 = vpop.f32.mrf.mxu0
    %v344 = vadd.f32 %v177, %v343
    %345 = vmatmul.f32.gmra.mxu0 %v255
    %v346 = vpop.f32.mrf.mxu0
    %v347 = vadd.f32 %v180, %v346
    %348 = vmatmul.f32.gmra.mxu0 %v258
    %v349 = vpop.f32.mrf.mxu0
    %v350 = vadd.f32 %v183, %v349
    %351 = vmatmul.f32.gmra.mxu0 %v261
    %v352 = vpop.f32.mrf.mxu0
    %v353 = vadd.f32 %v186, %v352
    %354 = vmatmul.f32.gmra.mxu0 %v264
    %v355 = vpop.f32.mrf.mxu0
    %v356 = vadd.f32 %v189, %v355
    %357 = vmatmul.f32.gmra.mxu0 %v267
    %v358 = vpop.f32.mrf.mxu0
    %v359 = vadd.f32 %v192, %v358
    %360 = vmatmul.f32.gmra.mxu0 %v270
    %v361 = vpop.f32.mrf.mxu0
    %v362 = vadd.f32 %v195, %v361
    %363 = vmatmul.f32.gmra.mxu0 %v273
    %v364 = vpop.f32.mrf.mxu0
    %v365 = vadd.f32 %v198, %v364
    %366 = vmatmul.f32.gmra.mxu0 %v276
    %v367 = vpop.f32.mrf.mxu0
    %v368 = vadd.f32 %v201, %v367
    %369 = vmatmul.f32.gmra.mxu0 %v279
    %v370 = vpop.f32.mrf.mxu0
    %v371 = vadd.f32 %v204, %v370
    %372 = vmatmul.f32.gmra.mxu0 %v282
    %v373 = vpop.f32.mrf.mxu0
    %v374 = vadd.f32 %v207, %v373
    %375 = vmatmul.f32.gmra.mxu0 %v285
    %v376 = vpop.f32.mrf.mxu0
    %v377 = vadd.f32 %v210, %v376
    %378 = vmatmul.f32.gmra.mxu0 %v288
    %v379 = vpop.f32.mrf.mxu0
    %v380 = vadd.f32 %v213, %v379
    %381 = vmatmul.f32.gmra.mxu0 %v291
    %v382 = vpop.f32.mrf.mxu0
    %v383 = vadd.f32 %v216, %v382
    %384 = vmatmul.f32.gmra.mxu0 %v294
    %v385 = vpop.f32.mrf.mxu0
    %v386 = vadd.f32 %v219, %v385
    %387 = vmatmul.f32.gmra.mxu0 %v297
    %v388 = vpop.f32.mrf.mxu0
    %v389 = vadd.f32 %v222, %v388
    %390 = vmatmul.f32.gmra.mxu0 %v300
    %v391 = vpop.f32.mrf.mxu0
    %v392 = vadd.f32 %v225, %v391
    %393 = vmatmul.f32.gmra.mxu0 %v303
    %v394 = vpop.f32.mrf.mxu0
    %v395 = vadd.f32 %v228, %v394
    %396 = vmatmul.f32.gmra.mxu0 %v306
    %v397 = vpop.f32.mrf.mxu0
    %v398 = vadd.f32 %v231, %v397
    %399 = vmatmul.f32.gmra.mxu0 %v309
    %v400 = vpop.f32.mrf.mxu0
    %v401 = vadd.f32 %v234, %v400
    %402 = vmatmul.f32.gmra.mxu0 %v312
    %v403 = vpop.f32.mrf.mxu0
    %v404 = vadd.f32 %v237, %v403
    %405 = vmatmul.f32.gmra.mxu0 %v315
    %v406 = vpop.f32.mrf.mxu0
    %v407 = vadd.f32 %v240, %v406
    %408 = vmatmul.f32.gmra.mxu0 %v318
    %v409 = vpop.f32.mrf.mxu0
    %v410 = vadd.f32 %v243, %v409
    %411 = vdwg.mxu0
    %v412 = vmax.f32 %v338, 0.0
    %v413 = vmax.f32 %v341, 0.0
    %v414 = vmax.f32 %v344, 0.0
    %v415 = vmax.f32 %v347, 0.0
    %v416 = vmax.f32 %v350, 0.0
    %v417 = vmax.f32 %v353, 0.0
    %v418 = vmax.f32 %v356, 0.0
    %v419 = vmax.f32 %v359, 0.0
    %v420 = vmax.f32 %v362, 0.0
    %v421 = vmax.f32 %v365, 0.0
    %v422 = vmax.f32 %v368, 0.0
    %v423 = vmax.f32 %v371, 0.0
    %v424 = vmax.f32 %v374, 0.0
    %v425 = vmax.f32 %v377, 0.0
    %v426 = vmax.f32 %v380, 0.0
    %v427 = vmax.f32 %v383, 0.0
    %v428 = vmax.f32 %v386, 0.0
    %v429 = vmax.f32 %v389, 0.0
    %v430 = vmax.f32 %v392, 0.0
    %v431 = vmax.f32 %v395, 0.0
    %v432 = vmax.f32 %v398, 0.0
    %v433 = vmax.f32 %v401, 0.0
    %v434 = vmax.f32 %v404, 0.0
    %v435 = vmax.f32 %v407, 0.0
    %v436 = vmax.f32 %v410, 0.0
    %v437 = vld [vmem:[%s2] sm:$0x77]
    %439 = vst [vmem:[#allocation1] ss:$2 sm:$0xff] %v437
    %v440 = vld.sshfl [vmem:[#allocation1] sm:$0xff pattern:$0x75316420]
    %v441 = vld.sshfl [vmem:[#allocation1 + $0x8] sm:$0xff pattern:$0x75316420]
    %vm443 = vcmask 588800
    %v444 = vsel %vm443, %v441, 0
    %446 = vmatpush.msra.mxu0 %v427
    %447 = vmatpush.msra.mxu0 %v426
    %448 = vmatpush.msra.mxu0 %v425
    %449 = vmatpush.msra.mxu0 %v424
    %450 = vmatpush.msra.mxu0 %v423
    %451 = vmatpush.msra.mxu0 %v422
    %452 = vmatpush.msra.mxu0 %v421
    %453 = vmatpush.msra.mxu0 %v420
    %454 = vmatpush.msra.mxu0 %v419
    %455 = vmatpush.msra.mxu0 %v418
    %456 = vmatpush.msra.mxu0 %v417
    %457 = vmatpush.msra.mxu0 %v416
    %458 = vmatpush.msra.mxu0 %v415
    %459 = vmatpush.msra.mxu0 %v414
    %460 = vmatpush.msra.mxu0 %v413
    %461 = vmatpush.msra.mxu0 %v412
    %462 = vmatmul.f32.gmra.mxu0 %v440
    %v463 = vpop.f32.mrf.mxu0
    %v464 = vadd.f32 0.0, %v463
    %465 = vdwg.mxu0
    %466 = vmatpush.msra.mxu0 0.0
    %467 = vmatpush.msra.mxu0 0.0
    %468 = vmatpush.msra.mxu0 0.0
    %469 = vmatpush.msra.mxu0 0.0
    %470 = vmatpush.msra.mxu0 0.0
    %471 = vmatpush.msra.mxu0 0.0
    %472 = vmatpush.msra.mxu0 0.0
    %473 = vmatpush.msra.mxu0 %v436
    %474 = vmatpush.msra.mxu0 %v435
    %475 = vmatpush.msra.mxu0 %v434
    %476 = vmatpush.msra.mxu0 %v433
    %477 = vmatpush.msra.mxu0 %v432
    %478 = vmatpush.msra.mxu0 %v431
    %479 = vmatpush.msra.mxu0 %v430
    %480 = vmatpush.msra.mxu0 %v429
    %481 = vmatpush.msra.mxu0 %v428
    %482 = vmatmul.f32.gmra.mxu0 %v444
    %v483 = vpop.f32.mrf.mxu0
    %v484 = vadd.f32 %v464, %v483
    %485 = vdwg.mxu0
    %s486 = scalar_lea.vmem %s2, 8
    %v487 = vld [vmem:[%s486] sm:$0x77]
    %489 = vst [vmem:[#allocation1] ss:$2 sm:$0xff] %v487
    %v490 = vld.sshfl [vmem:[#allocation1] sm:$0xff pattern:$0x75316420]
    %v491 = vld.sshfl [vmem:[#allocation1 + $0x8] sm:$0xff pattern:$0x75316420]
    %v493 = vsel %vm443, %v491, 0
    %495 = vmatpush.msra.mxu0 %v427
    %496 = vmatpush.msra.mxu0 %v426
    %497 = vmatpush.msra.mxu0 %v425
    %498 = vmatpush.msra.mxu0 %v424
    %499 = vmatpush.msra.mxu0 %v423
    %500 = vmatpush.msra.mxu0 %v422
    %501 = vmatpush.msra.mxu0 %v421
    %502 = vmatpush.msra.mxu0 %v420
    %503 = vmatpush.msra.mxu0 %v419
    %504 = vmatpush.msra.mxu0 %v418
    %505 = vmatpush.msra.mxu0 %v417
    %506 = vmatpush.msra.mxu0 %v416
    %507 = vmatpush.msra.mxu0 %v415
    %508 = vmatpush.msra.mxu0 %v414
    %509 = vmatpush.msra.mxu0 %v413
    %510 = vmatpush.msra.mxu0 %v412
    %511 = vmatmul.f32.gmra.mxu0 %v490
    %v512 = vpop.f32.mrf.mxu0
    %v513 = vadd.f32 0.0, %v512
    %514 = vdwg.mxu0
    %515 = vmatpush.msra.mxu0 0.0
    %516 = vmatpush.msra.mxu0 0.0
    %517 = vmatpush.msra.mxu0 0.0
    %518 = vmatpush.msra.mxu0 0.0
    %519 = vmatpush.msra.mxu0 0.0
    %520 = vmatpush.msra.mxu0 0.0
    %521 = vmatpush.msra.mxu0 0.0
    %522 = vmatpush.msra.mxu0 %v436
    %523 = vmatpush.msra.mxu0 %v435
    %524 = vmatpush.msra.mxu0 %v434
    %525 = vmatpush.msra.mxu0 %v433
    %526 = vmatpush.msra.mxu0 %v432
    %527 = vmatpush.msra.mxu0 %v431
    %528 = vmatpush.msra.mxu0 %v430
    %529 = vmatpush.msra.mxu0 %v429
    %530 = vmatpush.msra.mxu0 %v428
    %531 = vmatmul.f32.gmra.mxu0 %v493
    %v532 = vpop.f32.mrf.mxu0
    %v533 = vadd.f32 %v513, %v532
    %534 = vdwg.mxu0
    %v536 = vsel %vm77, %v533, 0
    %538 = vmatpush.msra.mxu0 0.0
    %539 = vmatpush.msra.mxu0 0.0
    %540 = vmatpush.msra.mxu0 0.0
    %541 = vmatpush.msra.mxu0 0.0
    %542 = vmatpush.msra.mxu0 0.0
    %543 = vmatpush.msra.mxu0 0.0
    %544 = vmatpush.msra.mxu0 0.0
    %545 = vmatpush.msra.mxu0 0.0
    %546 = vmatpush.msra.mxu0 0.0
    %547 = vmatpush.msra.mxu0 0.0
    %548 = vmatpush.msra.mxu0 0.0
    %549 = vmatpush.msra.mxu0 0.0
    %550 = vmatpush.msra.mxu0 0.0
    %551 = vmatpush.msra.mxu0 0.0
    %552 = vmatpush.msra.mxu0 %v76
    %553 = vmatpush.msra.mxu0 %v75
    %554 = vmatmul.f32.gmra.mxu0 %v536
    %v555 = vpop.f32.mrf.mxu0
    %v556 = vadd.f32 0.0, %v555
    %557 = vdwg.mxu0
    %v559 = vsel %vm77, %v484, 0
    %561 = vmatpush.msra.mxu0 0.0
    %562 = vmatpush.msra.mxu0 0.0
    %563 = vmatpush.msra.mxu0 0.0
    %564 = vmatpush.msra.mxu0 0.0
    %565 = vmatpush.msra.mxu0 0.0
    %566 = vmatpush.msra.mxu0 0.0
    %567 = vmatpush.msra.mxu0 0.0
    %568 = vmatpush.msra.mxu0 0.0
    %569 = vmatpush.msra.mxu0 0.0
    %570 = vmatpush.msra.mxu0 0.0
    %571 = vmatpush.msra.mxu0 0.0
    %572 = vmatpush.msra.mxu0 0.0
    %573 = vmatpush.msra.mxu0 0.0
    %574 = vmatpush.msra.mxu0 0.0
    %575 = vmatpush.msra.mxu0 %v47
    %576 = vmatpush.msra.mxu0 %v46
    %577 = vmatmul.f32.gmra.mxu0 %v559
    %v578 = vpop.f32.mrf.mxu0
    %v579 = vadd.f32 %v556, %v578
    %580 = vdwg.mxu0
    %v581 = vld [vmem:[%s4] sm:$0x1]
    %v582 = vld [vmem:[%s3] sm:$0xff]
    %v583 = vld [vmem:[%s3 + $0x8] sm:$0xff]
    %v585 = vsel %vm77, %v579, 0
    %587 = vmatpush.msra.mxu0 0.0
    %588 = vmatpush.msra.mxu0 0.0
    %589 = vmatpush.msra.mxu0 0.0
    %590 = vmatpush.msra.mxu0 0.0
    %591 = vmatpush.msra.mxu0 0.0
    %592 = vmatpush.msra.mxu0 0.0
    %593 = vmatpush.msra.mxu0 0.0
    %594 = vmatpush.msra.mxu0 0.0
    %595 = vmatpush.msra.mxu0 0.0
    %596 = vmatpush.msra.mxu0 0.0
    %597 = vmatpush.msra.mxu0 0.0
    %598 = vmatpush.msra.mxu0 0.0
    %599 = vmatpush.msra.mxu0 0.0
    %600 = vmatpush.msra.mxu0 0.0
    %601 = vmatpush.msra.mxu0 %v583
    %602 = vmatpush.msra.mxu0 %v582
    %603 = vmatmul.f32.gmra.mxu0 %v585
    %v604 = vpop.f32.mrf.mxu0
    %v605 = vadd.f32 0.0, %v604
    %606 = vdwg.mxu0
    %v607 = vadd.f32 %v581, %v605
    %s608 = scalar_lea.vmem %s3, 16
    %v609 = vld [vmem:[%s608] sm:$0xff]
    %v610 = vld [vmem:[%s608 + $0x8] sm:$0xff]
    %v611 = vrot.slane %v579, 1
    %v612 = vsel %vm77, %v611, 0
    %614 = vmatpush.msra.mxu0 0.0
    %615 = vmatpush.msra.mxu0 0.0
    %616 = vmatpush.msra.mxu0 0.0
    %617 = vmatpush.msra.mxu0 0.0
    %618 = vmatpush.msra.mxu0 0.0
    %619 = vmatpush.msra.mxu0 0.0
    %620 = vmatpush.msra.mxu0 0.0
    %621 = vmatpush.msra.mxu0 0.0
    %622 = vmatpush.msra.mxu0 0.0
    %623 = vmatpush.msra.mxu0 0.0
    %624 = vmatpush.msra.mxu0 0.0
    %625 = vmatpush.msra.mxu0 0.0
    %626 = vmatpush.msra.mxu0 0.0
    %627 = vmatpush.msra.mxu0 0.0
    %628 = vmatpush.msra.mxu0 %v610
    %629 = vmatpush.msra.mxu0 %v609
    %630 = vmatmul.f32.gmra.mxu0 %v612
    %v631 = vpop.f32.mrf.mxu0
    %v632 = vadd.f32 0.0, %v631
    %633 = vdwg.mxu0
    %v634 = vadd.f32 %v607, %v632
    %s635 = scalar_lea.vmem %s3, 32
    %v636 = vld [vmem:[%s635] sm:$0xff]
    %v637 = vld [vmem:[%s635 + $0x8] sm:$0xff]
    %v638 = vrot.slane %v579, 2
    %v639 = vsel %vm77, %v638, 0
    %641 = vmatpush.msra.mxu0 0.0
    %642 = vmatpush.msra.mxu0 0.0
    %643 = vmatpush.msra.mxu0 0.0
    %644 = vmatpush.msra.mxu0 0.0
    %645 = vmatpush.msra.mxu0 0.0
    %646 = vmatpush.msra.mxu0 0.0
    %647 = vmatpush.msra.mxu0 0.0
    %648 = vmatpush.msra.mxu0 0.0
    %649 = vmatpush.msra.mxu0 0.0
    %650 = vmatpush.msra.mxu0 0.0
    %651 = vmatpush.msra.mxu0 0.0
    %652 = vmatpush.msra.mxu0 0.0
    %653 = vmatpush.msra.mxu0 0.0
    %654 = vmatpush.msra.mxu0 0.0
    %655 = vmatpush.msra.mxu0 %v637
    %656 = vmatpush.msra.mxu0 %v636
    %657 = vmatmul.f32.gmra.mxu0 %v639
    %v658 = vpop.f32.mrf.mxu0
    %v659 = vadd.f32 0.0, %v658
    %660 = vdwg.mxu0
    %v661 = vadd.f32 %v634, %v659
    %vm662 = vcmask 253952
    %663 = vst.msk [vmem:[#allocation2] sm:$0x1] %vm662, %v661
    // Predicated region
    $region22: #{tpu_custom_call.1} parent=1 // pred_check
      _
    $region23: #{tpu_custom_call.1} parent=1 // pred_check_branch
      %665 = sbr.rel (0) target = $region25
    $region24: #{tpu_custom_call.1} parent=1 // pred_region
      %667 = vsyncadd [#allocation3], 0
      %s669 = sshll.u32 [#allocation2], 4
      %s670 = int_to_ptr.vmem [resolvable:$true] %s669
      %s671 = sshll.u32 %s5, 4
      %s672 = int_to_ptr.hbm [resolvable:$true] %s671
      %674 = dma.vmem_to_hbm [thread:$0]  %s670, 16, %s672, [#allocation3]
    $region25: #{tpu_custom_call.1} parent=1 // pred_fallthru
      _
    // Predicated region
    $region26: #{tpu_custom_call.1} parent=1 // pred_check
      _
    $region27: #{tpu_custom_call.1} parent=1 // pred_check_branch
      %676 = sbr.rel (0) target = $region29
    $region28: #{tpu_custom_call.1} parent=1 // pred_region
      %678 = dma.done [#allocation3], 16
    $region29: #{tpu_custom_call.1} parent=1 // pred_fallthru
      _
    %679 = vsyncpa [#allocation3], 1

</llo_original>
